<compile_context>
chip_gen: v5e
topology: v5e:2x2
jax: 0.10.0
libtpu: 0.0.40
codegen_flags: <defaults>
</compile_context>

<pallas_src>
import functools
import math

import jax
import jax.numpy as jnp
from jax.experimental import pallas as pl
from jax.experimental.pallas import tpu as pltpu


def _erf_approx(x):
    # Abramowitz & Stegun 7.1.26 (max abs error ~1.5e-7), built only from
    # Pallas-supported elementwise ops. The reciprocal goes to the EUP slot
    # (approx=True), freeing VALU slots for the polynomial.
    a1, a2, a3, a4, a5 = (0.254829592, -0.284496736, 1.421413741,
                          -1.453152027, 1.061405429)
    p = 0.3275911
    ax = jnp.abs(x)
    t = pl.reciprocal(1.0 + p * ax, approx=True)
    poly = ((((a5 * t + a4) * t + a3) * t + a2) * t + a1) * t
    y = 1.0 - poly * jnp.exp(-ax * ax)
    return jnp.where(x >= 0, y, -y)


def _gelu_exact(x):
    # Matches PyTorch nn.GELU() (approximate='none'): 0.5*x*(1+erf(x/sqrt(2))).
    return 0.5 * x * (1.0 + _erf_approx(x * (1.0 / math.sqrt(2.0))))


def _patch_decoding_kernel(x_ref, w1t_ref, b1_ref, w2t_ref, b2_ref, o_ref):
    # x_ref:   (C_in, tm)        pixels on lanes, channels on sublanes
    # w1t_ref: (C_mid, C_in)     transposed 1x1 ConvTranspose weight
    # b1_ref:  (C_mid, 1)        f32
    # w2t_ref: (4*C_out, C_mid)  transposed 2x2 ConvTranspose weight, rows (k,l,co)
    # b2_ref:  (4*C_out, 1)      f32
    # o_ref:   (4*C_out, tm)     lane-dense output
    y = jnp.dot(w1t_ref[...], x_ref[...], preferred_element_type=jnp.float32)
    y = _gelu_exact(y + b1_ref[...])                      # f32 math
    z = jnp.dot(w2t_ref[...], y.astype(w2t_ref.dtype),
                preferred_element_type=jnp.float32)
    o_ref[...] = (z + b2_ref[...]).astype(o_ref.dtype)


def patch_decoding_forward(x, params, *, patch_size=2, tm=1024,
                           compute_dtype=jnp.bfloat16):
    """x: (N, embed_dim, H, W) NCHW -> (N, out_chans, 2H, 2W) NCHW."""
    assert patch_size == 2, "kernel sizes in the module assume patch_size=2"
    w1, b1, w2, b2 = params["w1"], params["b1"], params["w2"], params["b2"]
    N, C_in, H, W = x.shape
    C_mid = w1.shape[1]          # embed_dim // 2
    C_out = w2.shape[1]          # out_chans
    C4 = 4 * C_out
    HW = H * W

    # Weight prep (tiny; constant-folded under jit when params are static).
    # torch ConvTranspose2d weight (C_mid, C_out, 2, 2):
    #   out[n, co, 2h+k, 2w+l] = sum_ci y[n, ci, h, w] * w2[ci, co, k, l] + b2[co]
    # Rows of w2t are ordered (k, l, co) row-major.
    w1t = jnp.transpose(w1).astype(compute_dtype)                       # (C_mid, C_in)
    w2t = jnp.transpose(w2, (2, 3, 1, 0)).reshape(C4, C_mid).astype(compute_dtype)
    b1c = b1.reshape(C_mid, 1).astype(jnp.float32)
    b2c = jnp.tile(b2, 4).reshape(C4, 1).astype(jnp.float32)

    # NCHW -> (N, C_in, H*W): pure reshape, channels already lead -> no transpose.
    x3 = x.reshape(N, C_in, HW).astype(compute_dtype)

    # Lane tile over pixels. No host-side pad: the last block may be ragged;
    # out-of-bounds lanes compute garbage but their stores are masked, and no
    # op mixes data across pixel lanes.
    if HW > tm:
        tm_eff = max(128, (tm // 128) * 128)   # multiple of 128 for lane tiling
    else:
        tm_eff = HW                            # single full-extent block
    grid = (N, pl.cdiv(HW, tm_eff))

    cbytes = jnp.dtype(compute_dtype).itemsize
    cost = pl.CostEstimate(
        flops=2 * N * HW * (C_in * C_mid + C_mid * C4),
        transcendentals=N * HW * C_mid,
        bytes_accessed=(N * HW * (C_in * cbytes + C4 * 4)
                        + (C_in * C_mid + C_mid * C4) * cbytes
                        + (C_mid + C4) * 4),
    )

    out3 = pl.pallas_call(
        _patch_decoding_kernel,
        out_shape=jax.ShapeDtypeStruct((N, C4, HW), x.dtype),
        grid_spec=pltpu.PrefetchScalarGridSpec(
            num_scalar_prefetch=0,
            grid=grid,
            in_specs=[
                pl.BlockSpec((None, C_in, tm_eff), lambda n, i: (n, 0, i)),
                pl.BlockSpec((C_mid, C_in), lambda n, i: (0, 0)),
                pl.BlockSpec((C_mid, 1), lambda n, i: (0, 0)),
                pl.BlockSpec((C4, C_mid), lambda n, i: (0, 0)),
                pl.BlockSpec((C4, 1), lambda n, i: (0, 0)),
            ],
            out_specs=pl.BlockSpec((None, C4, tm_eff), lambda n, i: (n, 0, i)),
        ),
        compiler_params=pltpu.CompilerParams(
            dimension_semantics=("parallel", "parallel")),
        cost_estimate=cost,
    )(x3, w1t, b1c, w2t, b2c)

    # (N, (k,l,co), H*W) -> (N, C_out, 2H, 2W). Small output-side layout pass
    # required only to match PyTorch's NCHW output exactly.
    out = out3.reshape(N, 2, 2, C_out, H, W)
    out = jnp.transpose(out, (0, 3, 4, 1, 5, 2)).reshape(N, C_out, 2 * H, 2 * W)
    return out


def patch_decoding_ref(x, params):
    """Pure-JAX reference of the PyTorch forward, NCHW in / NCHW out."""
    w1, b1, w2, b2 = params["w1"], params["b1"], params["w2"], params["b2"]
    N, _, H, W = x.shape
    C_out = w2.shape[1]
    y = jnp.einsum("nihw,io->nohw", x, w1) + b1[None, :, None, None]
    y = jax.nn.gelu(y, approximate=False)
    z = jnp.einsum("nihw,iokl->nohkwl", y, w2)
    z = z.reshape(N, C_out, 2 * H, 2 * W) + b2[None, :, None, None]
    return z


if __name__ == "__main__":
    N, H, W = 2, 8, 8
    embed_dim, out_chans, patch_size = 32, 3, 2
    C_mid = embed_dim // 2

    key = jax.random.PRNGKey(0)
    k = jax.random.split(key, 5)
    x = jax.random.normal(k[0], (N, embed_dim, H, W), jnp.float32)

    # Deterministic synthetic parameters (uniform, roughly PyTorch-default scale).
    bound1 = 1.0 / math.sqrt(embed_dim)          # ConvT #1: k=1
    bound2 = 1.0 / math.sqrt(C_mid * 2 * 2)      # ConvT #2: k=2
    params = {
        "w1": jax.random.uniform(k[1], (embed_dim, C_mid), jnp.float32,
                                 -bound1, bound1),
        "b1": jax.random.uniform(k[2], (C_mid,), jnp.float32, -bound1, bound1),
        "w2": jax.random.uniform(k[3], (C_mid, out_chans, 2, 2), jnp.float32,
                                 -bound2, bound2),
        "b2": jax.random.uniform(k[4], (out_chans,), jnp.float32,
                                 -bound2, bound2),
    }

    ref = patch_decoding_ref(x, params)

    # f32 compute path: matches the exact-erf reference closely (slack only for
    # the A&S erf polynomial and the EUP approximate reciprocal).
    fwd_f32 = jax.jit(functools.partial(
        patch_decoding_forward, patch_size=patch_size,
        compute_dtype=jnp.float32))
    out_f32 = jax.block_until_ready(fwd_f32(x, params))
    assert out_f32.shape == (N, out_chans, 2 * H, 2 * W), out_f32.shape
    err_f32 = float(jnp.max(jnp.abs(out_f32 - ref)))
    assert err_f32 < 3e-3, f"f32 path max abs error vs reference: {err_f32}"

    # Default bf16 matmul path (halves HBM traffic, native MXU rate); GELU/bias
    # math stays in f32, tolerance loosened for bf16 input rounding.
    fwd_bf16 = jax.jit(functools.partial(
        patch_decoding_forward, patch_size=patch_size,
        compute_dtype=jnp.bfloat16))
    out_bf16 = jax.block_until_ready(fwd_bf16(x, params))
    assert out_bf16.shape == (N, out_chans, 2 * H, 2 * W), out_bf16.shape
    err_bf16 = float(jnp.max(jnp.abs(out_bf16 - ref)))
    assert err_bf16 < 3e-2, f"bf16 path max abs error vs reference: {err_bf16}"

    print("KERNEL_OK")
</pallas_src>

<mosaic_0001>
module attributes {stable_mosaic.version = 11 : i64} {
  func.func @_patch_decoding_kernel(%arg0: i32, %arg1: i32, %arg2: memref<1x32x64xf32, #tpu.memory_space<vmem>>, %arg3: memref<16x32xf32, #tpu.memory_space<vmem>>, %arg4: memref<16x1xf32, #tpu.memory_space<vmem>>, %arg5: memref<12x16xf32, #tpu.memory_space<vmem>>, %arg6: memref<12x1xf32, #tpu.memory_space<vmem>>, %arg7: memref<1x12x64xf32, #tpu.memory_space<vmem>>) attributes {dimension_semantics = [#tpu.dimension_semantics<parallel>, #tpu.dimension_semantics<parallel>], iteration_bounds = array<i64: 2, 1>, scalar_prefetch = 0 : i64, scratch_operands = 0 : i64, tpu.core_type = #tpu.core_type<tc>, window_params = [{transform_indices = @transform_0, window_bounds = array<i64: 1, 32, 64>}, {pipeline_mode = #tpu.pipeline_mode<synchronous>, transform_indices = @transform_1, window_bounds = array<i64: 16, 32>}, {pipeline_mode = #tpu.pipeline_mode<synchronous>, transform_indices = @transform_2, window_bounds = array<i64: 16, 1>}, {pipeline_mode = #tpu.pipeline_mode<synchronous>, transform_indices = @transform_3, window_bounds = array<i64: 12, 16>}, {pipeline_mode = #tpu.pipeline_mode<synchronous>, transform_indices = @transform_4, window_bounds = array<i64: 12, 1>}, {transform_indices = @transform_5, window_bounds = array<i64: 1, 12, 64>}]} {
    %c0 = arith.constant 0 : index
    %c0_0 = arith.constant 0 : index
    %0 = vector.load %arg3[%c0, %c0_0] : memref<16x32xf32, #tpu.memory_space<vmem>>, vector<16x32xf32>
    %c0_1 = arith.constant 0 : index
    %c0_2 = arith.constant 0 : index
    %c0_3 = arith.constant 0 : index
    %1 = vector.load %arg2[%c0_1, %c0_2, %c0_3] : memref<1x32x64xf32, #tpu.memory_space<vmem>>, vector<1x32x64xf32>
    %2 = vector.shape_cast %1 : vector<1x32x64xf32> to vector<32x64xf32>
    %cst = arith.constant dense<0.000000e+00> : vector<16x64xf32>
    %3 = tpu.matmul %0, %2, %cst {dimension_numbers = #tpu.dot_dimension_numbers<[1], [0], [0], [1], [0, 0, 1, 1], [], []>} : vector<16x32xf32>, vector<32x64xf32>, vector<16x64xf32> -> vector<16x64xf32>
    %c0_4 = arith.constant 0 : index
    %c0_5 = arith.constant 0 : index
    %4 = vector.load %arg4[%c0_4, %c0_5] : memref<16x1xf32, #tpu.memory_space<vmem>>, vector<16x1xf32>
    %5 = vector.broadcast %4 : vector<16x1xf32> to vector<16x64xf32>
    %6 = arith.addf %3, %5 : vector<16x64xf32>
    %cst_6 = arith.constant 5.000000e-01 : f32
    %7 = vector.broadcast %cst_6 : f32 to vector<16x64xf32>
    %8 = arith.mulf %7, %6 : vector<16x64xf32>
    %cst_7 = arith.constant 0.707106769 : f32
    %9 = vector.broadcast %cst_7 : f32 to vector<16x64xf32>
    %10 = arith.mulf %6, %9 : vector<16x64xf32>
    %11 = math.absf %10 : vector<16x64xf32>
    %cst_8 = arith.constant 0.327591091 : f32
    %12 = vector.broadcast %cst_8 : f32 to vector<16x64xf32>
    %13 = arith.mulf %12, %11 : vector<16x64xf32>
    %cst_9 = arith.constant 1.000000e+00 : f32
    %14 = vector.broadcast %cst_9 : f32 to vector<16x64xf32>
    %15 = arith.addf %14, %13 : vector<16x64xf32>
    %16 = tpu.reciprocal %15 {approx = true} : vector<16x64xf32> -> vector<16x64xf32>
    %cst_10 = arith.constant 1.06140542 : f32
    %17 = vector.broadcast %cst_10 : f32 to vector<16x64xf32>
    %18 = arith.mulf %17, %16 : vector<16x64xf32>
    %cst_11 = arith.constant -1.45315206 : f32
    %19 = vector.broadcast %cst_11 : f32 to vector<16x64xf32>
    %20 = arith.addf %18, %19 : vector<16x64xf32>
    %21 = arith.mulf %20, %16 : vector<16x64xf32>
    %cst_12 = arith.constant 1.42141378 : f32
    %22 = vector.broadcast %cst_12 : f32 to vector<16x64xf32>
    %23 = arith.addf %21, %22 : vector<16x64xf32>
    %24 = arith.mulf %23, %16 : vector<16x64xf32>
    %cst_13 = arith.constant -0.284496725 : f32
    %25 = vector.broadcast %cst_13 : f32 to vector<16x64xf32>
    %26 = arith.addf %24, %25 : vector<16x64xf32>
    %27 = arith.mulf %26, %16 : vector<16x64xf32>
    %cst_14 = arith.constant 0.254829586 : f32
    %28 = vector.broadcast %cst_14 : f32 to vector<16x64xf32>
    %29 = arith.addf %27, %28 : vector<16x64xf32>
    %30 = arith.mulf %29, %16 : vector<16x64xf32>
    %cst_15 = arith.constant 0.000000e+00 : f32
    %31 = vector.broadcast %cst_15 : f32 to vector<16x64xf32>
    %32 = arith.subf %31, %11 : vector<16x64xf32>
    %33 = arith.mulf %32, %11 : vector<16x64xf32>
    %34 = math.exp %33 : vector<16x64xf32>
    %35 = arith.mulf %30, %34 : vector<16x64xf32>
    %cst_16 = arith.constant 1.000000e+00 : f32
    %36 = vector.broadcast %cst_16 : f32 to vector<16x64xf32>
    %37 = arith.subf %36, %35 : vector<16x64xf32>
    %cst_17 = arith.constant 0.000000e+00 : f32
    %38 = vector.broadcast %cst_17 : f32 to vector<16x64xf32>
    %39 = arith.cmpf oge, %10, %38 : vector<16x64xf32>
    %cst_18 = arith.constant 0.000000e+00 : f32
    %40 = vector.broadcast %cst_18 : f32 to vector<16x64xf32>
    %41 = arith.subf %40, %37 : vector<16x64xf32>
    %42 = arith.select %39, %37, %41 : vector<16x64xi1>, vector<16x64xf32>
    %cst_19 = arith.constant 1.000000e+00 : f32
    %43 = vector.broadcast %cst_19 : f32 to vector<16x64xf32>
    %44 = arith.addf %43, %42 : vector<16x64xf32>
    %45 = arith.mulf %8, %44 : vector<16x64xf32>
    %c0_20 = arith.constant 0 : index
    %c0_21 = arith.constant 0 : index
    %46 = vector.load %arg5[%c0_20, %c0_21] : memref<12x16xf32, #tpu.memory_space<vmem>>, vector<12x16xf32>
    %cst_22 = arith.constant dense<0.000000e+00> : vector<12x64xf32>
    %47 = tpu.matmul %46, %45, %cst_22 {dimension_numbers = #tpu.dot_dimension_numbers<[1], [0], [0], [1], [0, 0, 1, 1], [], []>} : vector<12x16xf32>, vector<16x64xf32>, vector<12x64xf32> -> vector<12x64xf32>
    %c0_23 = arith.constant 0 : index
    %c0_24 = arith.constant 0 : index
    %48 = vector.load %arg6[%c0_23, %c0_24] : memref<12x1xf32, #tpu.memory_space<vmem>>, vector<12x1xf32>
    %49 = vector.broadcast %48 : vector<12x1xf32> to vector<12x64xf32>
    %50 = arith.addf %47, %49 : vector<12x64xf32>
    %c0_25 = arith.constant 0 : index
    %c0_26 = arith.constant 0 : index
    %c0_27 = arith.constant 0 : index
    %51 = vector.load %arg7[%c0_25, %c0_26, %c0_27] : memref<1x12x64xf32, #tpu.memory_space<vmem>>, vector<1x12x64xf32>
    %52 = vector.shape_cast %51 : vector<1x12x64xf32> to vector<12x64xf32>
    %53 = vector.shape_cast %50 : vector<12x64xf32> to vector<1x12x64xf32>
    tpu.vector_store %arg7[%c0_25, %c0_26, %c0_27], %53 {strides = array<i32>} : memref<1x12x64xf32, #tpu.memory_space<vmem>>, vector<1x12x64xf32>,
    return
  }
  func.func @transform_0(%arg0: i32, %arg1: i32) -> (i32, i32, i32) {
    %c0_i32 = arith.constant 0 : i32
    %c0_i32_0 = arith.constant 0 : i32
    return %arg0, %c0_i32, %arg1 : i32, i32, i32
  }
  func.func @transform_1(%arg0: i32, %arg1: i32) -> (i32, i32) {
    %c0_i32 = arith.constant 0 : i32
    %c0_i32_0 = arith.constant 0 : i32
    %c0_i32_1 = arith.constant 0 : i32
    return %c0_i32, %c0_i32_0 : i32, i32
  }
  func.func @transform_2(%arg0: i32, %arg1: i32) -> (i32, i32) {
    %c0_i32 = arith.constant 0 : i32
    %c0_i32_0 = arith.constant 0 : i32
    %c0_i32_1 = arith.constant 0 : i32
    return %c0_i32, %c0_i32_0 : i32, i32
  }
  func.func @transform_3(%arg0: i32, %arg1: i32) -> (i32, i32) {
    %c0_i32 = arith.constant 0 : i32
    %c0_i32_0 = arith.constant 0 : i32
    %c0_i32_1 = arith.constant 0 : i32
    return %c0_i32, %c0_i32_0 : i32, i32
  }
  func.func @transform_4(%arg0: i32, %arg1: i32) -> (i32, i32) {
    %c0_i32 = arith.constant 0 : i32
    %c0_i32_0 = arith.constant 0 : i32
    %c0_i32_1 = arith.constant 0 : i32
    return %c0_i32, %c0_i32_0 : i32, i32
  }
  func.func @transform_5(%arg0: i32, %arg1: i32) -> (i32, i32, i32) {
    %c0_i32 = arith.constant 0 : i32
    %c0_i32_0 = arith.constant 0 : i32
    return %arg0, %c0_i32, %arg1 : i32, i32, i32
  }
}

</mosaic_0001>

<llo_original>
// kernel: tile.0
$region0: #{tile.0}
  %s0 = inlined_call_operand.vmem [shape: f32[4,3], index: 0, kind: input, shape index: {}]
  %s1 = inlined_call_operand.vmem [shape: f32[12,1], index: 1, kind: output, shape index: {}]
  $region1: #{tile.0} parent=0
    #allocation0 [shape = 'u8[4096]{0}', space=vmem, size = 0x1000, scoped, tag = 'scoped mem for input reshape']
    %s3 = ssub.s32 16, 1
    %v4 = vld [vmem:[%s0] sm:%s3]
    %5 = vst [vmem:[#allocation0] sm:%s3] %v4
    %v6 = vld [vmem:[#allocation0] sm:$0xf]
    %vm7 = vcmask 7168
    %8 = vst.msk [vmem:[%s1] ss:$3 sm:$0xf] %vm7, %v6
    %v9 = vld [vmem:[#allocation0] sm:$0xf]
    %10 = vrot.lane.b32.xlu0 %v9, 127
    %v11 = vpop.permute.xlu0 %10
    %vm12 = vcmask 7168
    %s13 = scalar_lea.vmem %s1, 1
    %14 = vst.msk [vmem:[%s13] ss:$3 sm:$0xf] %vm12, %v11
    %v15 = vld [vmem:[#allocation0] sm:$0xf]
    %16 = vrot.lane.b32.xlu0 %v15, 126
    %v17 = vpop.permute.xlu0 %16
    %vm18 = vcmask 7168
    %s19 = scalar_lea.vmem %s1, 2
    %20 = vst.msk [vmem:[%s19] ss:$3 sm:$0xf] %vm18, %v17

// kernel: tile.8
$region0: #{tile.8}
  #allocation0 [shape = 's32[1]{0}', space=sflag, size = 0x4, scoped, tag = 'scoped memory for tile.8']
  %s0 = inlined_call_operand.vmem [shape: f32[3], index: 0, kind: input, shape index: {}]
  %s1 = inlined_call_operand.vmem [shape: f32[4,3], index: 1, kind: output, shape index: {}]
  // Predicated region
  $region2: #{tile.8} parent=0 // pred_check
    _
  $region3: #{tile.8} parent=0 // pred_check_branch
    %3 = sbr.rel (0) target = $region5
  $region4: #{tile.8} parent=0 // pred_region
    _
  $region5: #{tile.8} parent=0 // pred_fallthru
    _
  %v4 = vld [vmem:[%s0] ss:$0 sm:$0xff]
  %5 = vst [vmem:[%s1] sm:$0xf] %v4

// kernel: patch_decoding_forward.1
$region0: #{patch_decoding_forward.1}
  #allocation0 [shape = 'u32[]', space=smem, size = 0x4, offset = 0x4, fixed_abs, tag = 'smem constant byte address 0x4 - core index']
  #allocation1 [shape = 'u32[72,128]{1,0:T(1,128)}', space=vmem, size = 0x9000, scoped, tag = 'internal scratch']
  %s0 = inlined_call_operand.vmem [shape: f32[2,32,64], index: 0, kind: input, shape index: {}]
  %s1 = inlined_call_operand.vmem [shape: f32[16,32], index: 1, kind: input, shape index: {}]
  %s2 = inlined_call_operand.vmem [shape: f32[16,1], index: 2, kind: input, shape index: {}]
  %s3 = inlined_call_operand.vmem [shape: f32[12,16], index: 3, kind: input, shape index: {}]
  %s4 = inlined_call_operand.vmem [shape: f32[12,1], index: 4, kind: input, shape index: {}]
  %s5 = inlined_call_operand.vmem [shape: f32[2,12,64], index: 5, kind: output, shape index: {}]
  %s6 = sld [smem:[#allocation0]]
  $region53: #{patch_decoding_forward.1} parent=0
    _
  %s8 = ssub.s32 1, %s6
  %s9 = scalar_select 0, %s8, %s6
  loop: start=0, step=1, limit=4
  $region2: #{patch_decoding_forward.1} parent=0 // loop_pre_header
    _
  $region3: #{patch_decoding_forward.1} parent=0 // loop_header
    %s11 = sphi 0, %s15
    %p12 = scmp.ge.s32.totalorder %s11, 4
    %s18 = sphi 0, %s30
    %s19 = sphi 0, %s26
    %s20 = sphi 0, %s18
    %s21 = sphi 0, %s19
    %s22 = sphi 0, %s20
    %s23 = sphi 0, %s21
    %s35 = sphi 0, %s37
    %s38 = sphi 0, %s35
    %s39 = sphi 0, %s38
    %s55 = sphi 0, %s39
    %s59 = sphi 0, %s59
    %s61 = sphi 0, %s59
    %s62 = sphi 0, %s61
    %s76 = sphi 0, %s62
    %s80 = sphi 0, %s80
    %s82 = sphi 0, %s80
    %s83 = sphi 0, %s82
    %s97 = sphi 0, %s83
    %s101 = sphi 0, %s101
    %s103 = sphi 0, %s101
    %s104 = sphi 0, %s103
    %s118 = sphi 0, %s104
    %s122 = sphi 0, %s122
    %s124 = sphi 0, %s122
    %s125 = sphi 0, %s124
    %s139 = sphi 0, %s125
    %s147 = sphi 0, %s149
    %s150 = sphi 0, %s147
    %s151 = sphi 0, %s150
    %s167 = sphi 0, %s151
  $region4: #{patch_decoding_forward.1} parent=0 // loop_header_branch
    %14 = sbr.rel (%p12) target = $region8
  $region5: #{patch_decoding_forward.1} parent=0 // loop_body
    %s16 = ssub.s32 %s11, 1
    %s17 = ssub.s32 %s11, 2
    %s24 = sadd.s32 1, %s19
    %p25 = scmp.ge.s32.totalorder %s24, 1
    %s26 = scalar_select %p25, 0, %s24
    %s27 = sadd.s32 1, %s18
    %s28 = scalar_select %p25, %s27, %s18
    %p29 = scmp.ge.s32.totalorder %s28, 2
    %s30 = scalar_select %p29, 0, %s28
    %s31 = ssub.s32 %s18, %s30
    %s32 = ssub.s32 %s19, %s26
    %s33 = sor.u32 %s31, %s32
    %p34 = scmp.eq.s32.totalorder %s33, 0
    %s36 = sadd.s32 %s35, 1
    %s37 = scalar_select %p34, %s35, %s36
    %p40 = pneg %p34
    %p41 = scmp.eq.s32.totalorder %s11, 1
    %p42 = por %p40, %p41
    %p43 = scmp.ne.s32.totalorder %s35, %s38
    %p44 = scmp.eq.s32.totalorder %s11, 0
    %p45 = por %p43, %p44
    %p46 = scmp.ne.s32.totalorder %s35, %s38
    %p47 = scmp.eq.s32.totalorder %s16, 1
    %p48 = por %p46, %p47
    %p49 = scmp.ne.s32.totalorder %s38, %s39
    %p50 = scmp.eq.s32.totalorder %s16, 0
    %p51 = por %p49, %p50
    %p52 = scmp.ne.s32.totalorder %s38, %s39
    %p53 = scmp.eq.s32.totalorder %s17, 1
    %p54 = por %p52, %p53
    %p56 = scmp.ne.s32.totalorder %s39, %s55
    %p57 = scmp.eq.s32.totalorder %s17, 0
    %p58 = por %p56, %p57
    %s60 = sadd.s32 %s59, 1
    %p63 = scmp.eq.s32.totalorder %s11, 1
    %p64 = scmp.ne.s32.totalorder %s59, %s61
    %p65 = scmp.eq.s32.totalorder %s11, 0
    %p66 = por %p64, %p65
    %p67 = scmp.ne.s32.totalorder %s59, %s61
    %p68 = scmp.eq.s32.totalorder %s16, 1
    %p69 = por %p67, %p68
    %p70 = scmp.ne.s32.totalorder %s61, %s62
    %p71 = scmp.eq.s32.totalorder %s16, 0
    %p72 = por %p70, %p71
    %p73 = scmp.ne.s32.totalorder %s61, %s62
    %p74 = scmp.eq.s32.totalorder %s17, 1
    %p75 = por %p73, %p74
    %p77 = scmp.ne.s32.totalorder %s62, %s76
    %p78 = scmp.eq.s32.totalorder %s17, 0
    %p79 = por %p77, %p78
    %s81 = sadd.s32 %s80, 1
    %p84 = scmp.eq.s32.totalorder %s11, 1
    %p85 = scmp.ne.s32.totalorder %s80, %s82
    %p86 = scmp.eq.s32.totalorder %s11, 0
    %p87 = por %p85, %p86
    %p88 = scmp.ne.s32.totalorder %s80, %s82
    %p89 = scmp.eq.s32.totalorder %s16, 1
    %p90 = por %p88, %p89
    %p91 = scmp.ne.s32.totalorder %s82, %s83
    %p92 = scmp.eq.s32.totalorder %s16, 0
    %p93 = por %p91, %p92
    %p94 = scmp.ne.s32.totalorder %s82, %s83
    %p95 = scmp.eq.s32.totalorder %s17, 1
    %p96 = por %p94, %p95
    %p98 = scmp.ne.s32.totalorder %s83, %s97
    %p99 = scmp.eq.s32.totalorder %s17, 0
    %p100 = por %p98, %p99
    %s102 = sadd.s32 %s101, 1
    %p105 = scmp.eq.s32.totalorder %s11, 1
    %p106 = scmp.ne.s32.totalorder %s101, %s103
    %p107 = scmp.eq.s32.totalorder %s11, 0
    %p108 = por %p106, %p107
    %p109 = scmp.ne.s32.totalorder %s101, %s103
    %p110 = scmp.eq.s32.totalorder %s16, 1
    %p111 = por %p109, %p110
    %p112 = scmp.ne.s32.totalorder %s103, %s104
    %p113 = scmp.eq.s32.totalorder %s16, 0
    %p114 = por %p112, %p113
    %p115 = scmp.ne.s32.totalorder %s103, %s104
    %p116 = scmp.eq.s32.totalorder %s17, 1
    %p117 = por %p115, %p116
    %p119 = scmp.ne.s32.totalorder %s104, %s118
    %p120 = scmp.eq.s32.totalorder %s17, 0
    %p121 = por %p119, %p120
    %s123 = sadd.s32 %s122, 1
    %p126 = scmp.eq.s32.totalorder %s11, 1
    %p127 = scmp.ne.s32.totalorder %s122, %s124
    %p128 = scmp.eq.s32.totalorder %s11, 0
    %p129 = por %p127, %p128
    %p130 = scmp.ne.s32.totalorder %s122, %s124
    %p131 = scmp.eq.s32.totalorder %s16, 1
    %p132 = por %p130, %p131
    %p133 = scmp.ne.s32.totalorder %s124, %s125
    %p134 = scmp.eq.s32.totalorder %s16, 0
    %p135 = por %p133, %p134
    %p136 = scmp.ne.s32.totalorder %s124, %s125
    %p137 = scmp.eq.s32.totalorder %s17, 1
    %p138 = por %p136, %p137
    %p140 = scmp.ne.s32.totalorder %s125, %s139
    %p141 = scmp.eq.s32.totalorder %s17, 0
    %p142 = por %p140, %p141
    %s143 = ssub.s32 %s18, %s30
    %s144 = ssub.s32 %s19, %s26
    %s145 = sor.u32 %s143, %s144
    %p146 = scmp.eq.s32.totalorder %s145, 0
    %s148 = sadd.s32 %s147, 1
    %s149 = scalar_select %p146, %s147, %s148
    %p152 = pneg %p146
    %p153 = scmp.eq.s32.totalorder %s11, 1
    %p154 = por %p152, %p153
    %p155 = scmp.ne.s32.totalorder %s147, %s150
    %p156 = scmp.eq.s32.totalorder %s11, 0
    %p157 = por %p155, %p156
    %p158 = scmp.ne.s32.totalorder %s147, %s150
    %p159 = scmp.eq.s32.totalorder %s16, 1
    %p160 = por %p158, %p159
    %p161 = scmp.ne.s32.totalorder %s150, %s151
    %p162 = scmp.eq.s32.totalorder %s16, 0
    %p163 = por %p161, %p162
    %p164 = scmp.ne.s32.totalorder %s150, %s151
    %p165 = scmp.eq.s32.totalorder %s17, 1
    %p166 = por %p164, %p165
    %p168 = scmp.ne.s32.totalorder %s151, %s167
    %p169 = scmp.eq.s32.totalorder %s17, 0
    %p170 = por %p168, %p169
    %p171 = scmp.le.s32.totalorder 1, %s11
    %p172 = scmp.lt.s32.totalorder %s11, 3
    %p173 = pnand %p171, %p172
    %p174 = pneg %p173
    // Predicated region
    $region9: #{patch_decoding_forward.1} parent=5 // pred_check
      _
    $region10: #{patch_decoding_forward.1} parent=5 // pred_check_branch
      %176 = sbr.rel (%p173) target = $region12
    $region11: #{patch_decoding_forward.1} parent=5 // pred_region
      %s177 = ssub.s32 %s11, 1
      // Predicated region
      $region13: #{patch_decoding_forward.1} parent=11 // pred_check
        %p178 = pneg %p72
      $region14: #{patch_decoding_forward.1} parent=11 // pred_check_branch
        %180 = sbr.rel (%p178) target = $region16
      $region15: #{patch_decoding_forward.1} parent=11 // pred_region
        _
      $region16: #{patch_decoding_forward.1} parent=11 // pred_fallthru
        _
      // Predicated region
      $region17: #{patch_decoding_forward.1} parent=11 // pred_check
        %p181 = pneg %p93
      $region18: #{patch_decoding_forward.1} parent=11 // pred_check_branch
        %183 = sbr.rel (%p181) target = $region20
      $region19: #{patch_decoding_forward.1} parent=11 // pred_region
        _
      $region20: #{patch_decoding_forward.1} parent=11 // pred_fallthru
        _
      // Predicated region
      $region21: #{patch_decoding_forward.1} parent=11 // pred_check
        %p184 = pneg %p114
      $region22: #{patch_decoding_forward.1} parent=11 // pred_check_branch
        %186 = sbr.rel (%p184) target = $region24
      $region23: #{patch_decoding_forward.1} parent=11 // pred_region
        _
      $region24: #{patch_decoding_forward.1} parent=11 // pred_fallthru
        _
      // Predicated region
      $region25: #{patch_decoding_forward.1} parent=11 // pred_check
        %p187 = pneg %p135
      $region26: #{patch_decoding_forward.1} parent=11 // pred_check_branch
        %189 = sbr.rel (%p187) target = $region28
      $region27: #{patch_decoding_forward.1} parent=11 // pred_region
        _
      $region28: #{patch_decoding_forward.1} parent=11 // pred_fallthru
        _
    $region12: #{patch_decoding_forward.1} parent=5 // pred_fallthru
      _
    %p190 = scmp.lt.s32.totalorder %s11, 2
    // Predicated region
    $region29: #{patch_decoding_forward.1} parent=5 // pred_check
      %p191 = pneg %p190
    $region30: #{patch_decoding_forward.1} parent=5 // pred_check_branch
      %193 = sbr.rel (%p191) target = $region32
    $region31: #{patch_decoding_forward.1} parent=5 // pred_region
      // Predicated region
      $region33: #{patch_decoding_forward.1} parent=31 // pred_check
        %p194 = pneg %p45
      $region34: #{patch_decoding_forward.1} parent=31 // pred_check_branch
        %196 = sbr.rel (%p194) target = $region36
      $region35: #{patch_decoding_forward.1} parent=31 // pred_region
        %p197 = scmp.lt.s32.totalorder %s18, 1
        %s198 = scalar_select %p197, %s18, 1
        %p199 = scmp.lt.s32.totalorder %s19, 0
        %s200 = scalar_select %p199, %s19, 0
        %s201 = smul.addr %s198, 4
        %s202 = sadd.s32 %s200, %s201
        %s203 = smul.addr %s202, 8
        %s204 = scalar_lea.vmem %s0, %s203
      $region36: #{patch_decoding_forward.1} parent=31 // pred_fallthru
        _
    $region32: #{patch_decoding_forward.1} parent=5 // pred_fallthru
      _
    %p205 = scmp.le.s32.totalorder 1, %s11
    %p206 = scmp.lt.s32.totalorder %s11, 3
    %p207 = pnand %p205, %p206
    %p208 = pneg %p207
    // Predicated region
    $region37: #{patch_decoding_forward.1} parent=5 // pred_check
      _
    $region38: #{patch_decoding_forward.1} parent=5 // pred_check_branch
      %210 = sbr.rel (%p207) target = $region40
    $region39: #{patch_decoding_forward.1} parent=5 // pred_region
      %s211 = ssub.s32 %s11, 1
      %p212 = scmp.lt.s32.totalorder %s20, 1
      %s213 = scalar_select %p212, %s20, 1
      %p214 = scmp.lt.s32.totalorder %s21, 0
      %s215 = scalar_select %p214, %s21, 0
      %s216 = smul.addr %s213, 4
      %s217 = sadd.s32 %s215, %s216
      %s218 = smul.addr %s217, 8
      %s219 = scalar_lea.vmem %s0, %s218
      %p220 = pneg %p51
      %p221 = pneg %p48
      %p222 = pneg %p72
      %p223 = pneg %p69
      %p224 = pneg %p93
      %p225 = pneg %p90
      %p226 = pneg %p114
      %p227 = pneg %p111
      %p228 = pneg %p135
      %p229 = pneg %p132
      %p230 = pneg %p163
      %p231 = pneg %p160
      %p232 = scmp.lt.s32.totalorder %s20, 1
      %s233 = scalar_select %p232, %s20, 1
      %p234 = scmp.lt.s32.totalorder %s21, 0
      %s235 = scalar_select %p234, %s21, 0
      %s236 = smul.addr %s233, 2
      %s237 = sadd.s32 %s235, %s236
      %s238 = smul.addr %s237, 8
      %s239 = scalar_lea.vmem %s5, %s238
      %p240 = scmp.lt.s32.totalorder %s20, 1
      %s241 = scalar_select %p240, %s20, 1
      %p242 = scmp.lt.s32.totalorder %s21, 0
      %s243 = scalar_select %p242, %s21, 0
      %s244 = smul.addr %s241, 4
      %s245 = sadd.s32 %s243, %s244
      %s246 = smul.addr %s245, 8
      %s247 = scalar_lea.vmem %s0, %s246
      %p248 = scmp.lt.s32.totalorder %s20, 1
      %s249 = scalar_select %p248, %s20, 1
      %p250 = scmp.lt.s32.totalorder %s21, 0
      %s251 = scalar_select %p250, %s21, 0
      %s252 = smul.addr %s249, 2
      %s253 = sadd.s32 %s251, %s252
      %s254 = smul.addr %s253, 8
      %s255 = scalar_lea.vmem %s5, %s254
      %v256 = vld [vmem:[%s1] sm:$0xff]
      %v257 = vld [vmem:[%s1 + $0x8] sm:$0xff]
      %v258 = vld [vmem:[%s247] sm:$0xff]
      %v259 = vld [vmem:[%s247 + $0x8] sm:$0xff]
      %v260 = vld [vmem:[%s247 + $0x10] sm:$0xff]
      %v261 = vld [vmem:[%s247 + $0x18] sm:$0xff]
      %v262 = vld [vmem:[%s2] sm:$0xff]
      %v263 = vld [vmem:[%s2 + $0x8] sm:$0xff]
      %265 = vset.pattern.permute.xlu0 0
      %266 = vperm.xlu0 %265, %v262
      %v267 = vpop.permute.xlu0 %266
      %270 = vset.pattern.permute.xlu0 0
      %271 = vperm.xlu0 %270, %v263
      %v272 = vpop.permute.xlu0 %271
      %vm274 = vcmask 261120
      %v276 = vsel %vm274, %v256, 0
      %v279 = vsel %vm274, %v257, 0
      %281 = vmatpush.msra.mxu0 0.0
      %282 = vmatpush.msra.mxu0 0.0
      %283 = vmatpush.msra.mxu0 0.0
      %284 = vmatpush.msra.mxu0 0.0
      %285 = vmatpush.msra.mxu0 0.0
      %286 = vmatpush.msra.mxu0 0.0
      %287 = vmatpush.msra.mxu0 0.0
      %288 = vmatpush.msra.mxu0 0.0
      %289 = vmatpush.msra.mxu0 0.0
      %290 = vmatpush.msra.mxu0 0.0
      %291 = vmatpush.msra.mxu0 0.0
      %292 = vmatpush.msra.mxu0 0.0
      %293 = vmatpush.msra.mxu0 %v261
      %294 = vmatpush.msra.mxu0 %v260
      %295 = vmatpush.msra.mxu0 %v259
      %296 = vmatpush.msra.mxu0 %v258
      %297 = vmatmul.f32.gmra.mxu0 %v276
      %v298 = vpop.f32.mrf.mxu0
      %v299 = vadd.f32 %v267, %v298
      %300 = vmatmul.f32.gmra.mxu0 %v279
      %v301 = vpop.f32.mrf.mxu0
      %v302 = vadd.f32 %v272, %v301
      %303 = vdwg.mxu0
      %v304 = vmul.f32 %v299, 0.5
      %v305 = vmul.f32 %v302, 0.5
      %v306 = vmul.f32 %v299, 0.70710677
      %v307 = vmul.f32 %v302, 0.70710677
      %v308 = vand.u32 2147483647, %v306
      %v309 = vand.u32 2147483647, %v307
      %v310 = vmul.f32 %v308, 0.3275911
      %v311 = vmul.f32 %v309, 0.3275911
      %v312 = vadd.f32 %v310, 1.0
      %v313 = vadd.f32 %v311, 1.0
      %v314 = vrcp.pop %v312
      %v315 = vrcp.pop %v313
      %v316 = vmul.f32 %v314, 1.0614054
      %v317 = vmul.f32 %v315, 1.0614054
      %v318 = vadd.f32 %v316, -1.4531521
      %v319 = vadd.f32 %v317, -1.4531521
      %v320 = vmul.f32 %v318, %v314
      %v321 = vmul.f32 %v319, %v315
      %v322 = vadd.f32 %v320, 1.4214138
      %v323 = vadd.f32 %v321, 1.4214138
      %v324 = vmul.f32 %v322, %v314
      %v325 = vmul.f32 %v323, %v315
      %v326 = vadd.f32 %v324, -0.28449672
      %v327 = vadd.f32 %v325, -0.28449672
      %v328 = vmul.f32 %v326, %v314
      %v329 = vmul.f32 %v327, %v315
      %v330 = vadd.f32 %v328, 0.2548296
      %v331 = vadd.f32 %v329, 0.2548296
      %v332 = vmul.f32 %v330, %v314
      %v333 = vmul.f32 %v331, %v315
      %v334 = vsub.f32 0.0, %v308
      %v335 = vsub.f32 0.0, %v309
      %v336 = vmul.f32 %v334, %v308
      %v337 = vmul.f32 %v335, %v309
      %v338 = vmul.f32 %v336, 1.442695
      %v339 = vpow.pop %v338
      %v340 = vmul.f32 %v337, 1.442695
      %v341 = vpow.pop %v340
      %v342 = vmul.f32 %v332, %v339
      %v343 = vmul.f32 %v333, %v341
      %v344 = vsub.f32 1.0, %v342
      %v345 = vsub.f32 1.0, %v343
      %vm346 = vcmp.ge.f32.partialorder %v306, 0.0
      %vm347 = vcmp.ge.f32.partialorder %v307, 0.0
      %v348 = vsub.f32 0.0, %v344
      %v349 = vsub.f32 0.0, %v345
      %v350 = vsel %vm346, %v344, %v348
      %v351 = vsel %vm347, %v345, %v349
      %v352 = vadd.f32 %v350, 1.0
      %v353 = vadd.f32 %v351, 1.0
      %v354 = vmul.f32 %v304, %v352
      %v355 = vmul.f32 %v305, %v353
      %v356 = vld [vmem:[%s3] sm:$0xff]
      %v357 = vld [vmem:[%s3 + $0x8] sm:$0xf]
      %v358 = vld [vmem:[%s4] sm:$0xff]
      %v359 = vld [vmem:[%s4 + $0x8] sm:$0xf]
      %361 = vset.pattern.permute.xlu0 0
      %362 = vperm.xlu0 %361, %v358
      %v363 = vpop.permute.xlu0 %362
      %366 = vset.pattern.permute.xlu0 0
      %367 = vperm.xlu0 %366, %v359
      %v368 = vpop.permute.xlu0 %367
      %vm370 = vcmask 130048
      %v372 = vsel %vm370, %v356, 0
      %v375 = vsel %vm370, %v357, 0
      %377 = vmatpush.msra.mxu0 0.0
      %378 = vmatpush.msra.mxu0 0.0
      %379 = vmatpush.msra.mxu0 0.0
      %380 = vmatpush.msra.mxu0 0.0
      %381 = vmatpush.msra.mxu0 0.0
      %382 = vmatpush.msra.mxu0 0.0
      %383 = vmatpush.msra.mxu0 0.0
      %384 = vmatpush.msra.mxu0 0.0
      %385 = vmatpush.msra.mxu0 0.0
      %386 = vmatpush.msra.mxu0 0.0
      %387 = vmatpush.msra.mxu0 0.0
      %388 = vmatpush.msra.mxu0 0.0
      %389 = vmatpush.msra.mxu0 0.0
      %390 = vmatpush.msra.mxu0 0.0
      %391 = vmatpush.msra.mxu0 %v355
      %392 = vmatpush.msra.mxu0 %v354
      %393 = vmatmul.f32.gmra.mxu0 %v372
      %v394 = vpop.f32.mrf.mxu0
      %v395 = vadd.f32 %v363, %v394
      %396 = vmatmul.f32.gmra.mxu0 %v375
      %v397 = vpop.f32.mrf.mxu0
      %v398 = vadd.f32 %v368, %v397
      %399 = vdwg.mxu0
      %vm400 = vcmask 523264
      %401 = vst.msk [vmem:[%s255] sm:$0xff] %vm400, %v395
      %vm402 = vcmask 519168
      %403 = vst.msk [vmem:[%s255 + $0x8] sm:$0xf] %vm402, %v398
      %p404 = scmp.lt.s32.totalorder %s20, 1
      %s405 = scalar_select %p404, %s20, 1
      %p406 = scmp.lt.s32.totalorder %s21, 0
      %s407 = scalar_select %p406, %s21, 0
      %s408 = smul.addr %s405, 2
      %s409 = sadd.s32 %s407, %s408
      %s410 = smul.addr %s409, 8
      %s411 = scalar_lea.vmem %s5, %s410
      // Predicated region
      $region41: #{patch_decoding_forward.1} parent=39 // pred_check
        %p412 = pneg %p160
      $region42: #{patch_decoding_forward.1} parent=39 // pred_check_branch
        %414 = sbr.rel (%p412) target = $region44
      $region43: #{patch_decoding_forward.1} parent=39 // pred_region
        _
      $region44: #{patch_decoding_forward.1} parent=39 // pred_fallthru
        _
    $region40: #{patch_decoding_forward.1} parent=5 // pred_fallthru
      _
    %p415 = scmp.le.s32.totalorder 2, %s11
    // Predicated region
    $region45: #{patch_decoding_forward.1} parent=5 // pred_check
      %p416 = pneg %p415
    $region46: #{patch_decoding_forward.1} parent=5 // pred_check_branch
      %418 = sbr.rel (%p416) target = $region48
    $region47: #{patch_decoding_forward.1} parent=5 // pred_region
      %s419 = ssub.s32 %s11, 2
      // Predicated region
      $region49: #{patch_decoding_forward.1} parent=47 // pred_check
        %p420 = pneg %p166
      $region50: #{patch_decoding_forward.1} parent=47 // pred_check_branch
        %422 = sbr.rel (%p420) target = $region52
      $region51: #{patch_decoding_forward.1} parent=47 // pred_region
        %p423 = scmp.lt.s32.totalorder %s22, 1
        %s424 = scalar_select %p423, %s22, 1
        %p425 = scmp.lt.s32.totalorder %s23, 0
        %s426 = scalar_select %p425, %s23, 0
        %s427 = smul.addr %s424, 2
        %s428 = sadd.s32 %s426, %s427
        %s429 = smul.addr %s428, 8
        %s430 = scalar_lea.vmem %s5, %s429
      $region52: #{patch_decoding_forward.1} parent=47 // pred_fallthru
        _
    $region48: #{patch_decoding_forward.1} parent=5 // pred_fallthru
      _
  $region6: #{patch_decoding_forward.1} parent=0 // loop_footer
    %s15 = sadd.s32 1, %s11
  $region7: #{patch_decoding_forward.1} parent=0 // loop_footer_branch
    %10 = sbr.rel target = $region3
  $region8: #{patch_decoding_forward.1} parent=0 // loop_exit
    _

</llo_original>
